<compile_context>
chip_gen: v5e
topology: v5e:2x2
jax: 0.10.0
libtpu: 0.0.40
codegen_flags: <defaults>
</compile_context>

<pallas_src>
import jax
import jax.numpy as jnp
from jax import lax
from jax.experimental import pallas as pl
from jax.experimental.pallas import tpu as pltpu


_LANE = 128
_BIG = 1e30              # masks padded rows/cols out of the minima
_BYPASS_WORK = 1 << 20   # below this Bx*Bt*D, plain XLA beats a custom call


# --------------------------------------------------------------------------- kernel
def _batch_matched_mse_kernel(xs_ref, ts_ref, x_ref, t_ref, rowm_ref, colm_ref,
                              acc_ref):
    """One (tm, tn) tile of halved squared distances; emits per-tile row/col mins.

    xs_ref : (tm, 1)   halved squared norms of the x rows (f32, hoisted)
    ts_ref : (1, tn)   halved squared norms of the t rows (f32, hoisted)
    x_ref  : (tm, tk)  input feature tile  (f32)
    t_ref  : (tn, tk)  target feature tile (f32)
    rowm_ref: (1,1,tm) partial row-min (min over this target tile)
    colm_ref: (1,1,tn) partial col-min (min over this input tile)
    acc_ref: (tm, tn)  f32 Gram accumulator (VMEM scratch, carried over K)
    """
    k = pl.program_id(2)

    @pl.when(k == 0)
    def _init():
        acc_ref[...] = jnp.zeros_like(acc_ref)

    # MXU Gram tile, f32 accumulation.
    acc_ref[...] += lax.dot_general(
        x_ref[...], t_ref[...],
        dimension_numbers=(((1,), (1,)), ((), ())),
        preferred_element_type=jnp.float32,
    )

    @pl.when(k == pl.num_programs(2) - 1)
    def _finalize():
        # Halved squared distance; clamp guards catastrophic-cancellation negatives.
        sq = jnp.maximum(xs_ref[...] + ts_ref[...] - acc_ref[...], 0.0)
        rowm_ref[...] = jnp.min(sq, axis=1).reshape(1, 1, -1)   # lane-dense (1,1,tm)
        colm_ref[...] = jnp.min(sq, axis=0).reshape(1, 1, -1)   # lane-dense (1,1,tn)


# ------------------------------------------------------------------------- helpers
def _round_up(n, m):
    return -(-n // m) * m


def _vmem_cap_bytes():
    try:
        phys = int(pltpu.get_tpu_info().vmem_capacity_bytes)
    except Exception:
        phys = 64 << 20          # conservative (v7x-sized) fallback
    # ~15% headroom for Mosaic bookkeeping: ~54 MiB on v7x, ~109 MiB on v5e/v6e.
    return max(int(phys * 0.85), 32 << 20)


def _pick_batch_tile(bp, pref, min_blocks=1):
    """Largest multiple of 128 dividing bp, <= pref, leaving >= min_blocks blocks."""
    nb = bp // _LANE
    best = 1
    for c in range(1, nb + 1):
        if nb % c == 0 and _LANE * c <= max(pref, _LANE) and nb // c >= min_blocks:
            best = c
    return _LANE * best


def _pick_feature_tile(d, block_k):
    if block_k is None:
        if d <= 2048:
            return d, d                     # single full-extent K block
        tk = 512
        return tk, _round_up(d, tk)
    tk = int(block_k)
    if tk >= d:
        return d, d
    assert tk % _LANE == 0, "block_k must be a multiple of 128 (or >= feature dim)"
    return tk, _round_up(d, tk)


def _vmem_estimate(tm, tn, tk):
    b = 3 * (tm + tn) * tk * 4      # up to 3-deep pipelined f32 feature tiles
    b += 6 * tm * tn * 4            # Gram scratch + sq/min intermediates headroom
    b += 8 * (tm + tn) * 4          # norm blocks + partial-min output blocks
    return b


def _fit_tiles(bpx, bpt, d, tm, tn, tk, dp, cap):
    """Shrink tiles (K first, then tn, then tm) until the VMEM estimate fits."""
    while _vmem_estimate(tm, tn, tk) + (8 << 20) > cap:
        if tk == dp and tk > 512:
            tk = 512                               # switch to K-tiling
            dp = _round_up(d, tk)
        elif tn > _LANE:
            tn = _pick_batch_tile(bpt, tn - _LANE)
        elif tm > _LANE:
            tm = _pick_batch_tile(bpx, tm - _LANE)
        elif tk > _LANE:
            tk //= 2
            dp = _round_up(d, tk)
        else:
            break
    return tm, tn, tk, dp


def _maybe_buffered_spec(block_shape, index_map, depth):
    if depth <= 2:
        return pl.BlockSpec(block_shape, index_map)
    try:
        return pl.BlockSpec(block_shape, index_map, pipeline_mode=pl.Buffered(depth))
    except TypeError:
        # TODO(synk): pipeline_mode/Buffered unavailable on this JAX; default 2-deep.
        return pl.BlockSpec(block_shape, index_map)


def _direct_loss(x, t, reduction="mean"):
    """Plain-XLA direct-difference path (bypass for tiny problems + reference)."""
    x = x.astype(jnp.float32)
    t = t.astype(jnp.float32)
    d2 = (x[:, None, :] - t[None, :, :]) ** 2
    m = jnp.mean(d2, axis=-1) if reduction == "mean" else jnp.sum(d2, axis=-1)
    v = jnp.concatenate([jnp.min(m, axis=1), jnp.min(m, axis=0)])
    return jnp.mean(v) if reduction == "mean" else jnp.sum(v)


# -------------------------------------------------------------------------- wrapper
def batch_matched_mse_loss(x, t, reduction="mean", *,
                           block_m=None, block_n=None, block_k=None,
                           use_pallas=None):
    """x: (Bx, D) inputs, t: (Bt, D) targets.  Returns a scalar loss."""
    if reduction not in ("mean", "sum"):
        # TODO(synk): reduction='none' returns an unreduced (Bx+Bt, D) tensor; not implemented.
        raise NotImplementedError("only reduction='mean'/'sum' are supported")

    x = jnp.asarray(x)
    t = jnp.asarray(t)
    bx, d = x.shape
    bt, dt = t.shape
    assert d == dt, (x.shape, t.shape)

    if use_pallas is None:
        use_pallas = bx >= _LANE and bt >= _LANE and bx * bt * d >= _BYPASS_WORK
    if not use_pallas:
        return _direct_loss(x, t, reduction)

    # f32 operands for the Gram dot: the row/col minima are exactly the entries with
    # the worst relative cancellation error.
    xf = x.astype(jnp.float32)
    tf = t.astype(jnp.float32)

    cap = _vmem_cap_bytes()
    bpx = _round_up(bx, _LANE)
    bpt = _round_up(bt, _LANE)

    # Target tile large (full extent whenever it fits -> fetched once); input axis
    # split so the "parallel" i axis spans both v7x TensorCores; features tiled only
    # when D is large.
    tn_pref = 1024 if cap >= (80 << 20) else 512
    tm = int(block_m) if block_m is not None else _pick_batch_tile(bpx, 256, min_blocks=2)
    tn = int(block_n) if block_n is not None else _pick_batch_tile(bpt, tn_pref)
    assert bpx % tm == 0 and (tm % _LANE == 0 or tm == bpx), (tm, bpx)
    assert bpt % tn == 0 and (tn % _LANE == 0 or tn == bpt), (tn, bpt)
    tk, dp = _pick_feature_tile(d, block_k)
    tm, tn, tk, dp = _fit_tiles(bpx, bpt, d, tm, tn, tk, dp, cap)
    n_i, n_j, n_k = bpx // tm, bpt // tn, dp // tk

    # Zero padding is harmless for the dot; padded rows/cols are masked below.
    if bpx != bx or dp != d:
        xf = jnp.pad(xf, ((0, bpx - bx), (0, dp - d)))
    if bpt != bt or dp != d:
        tf = jnp.pad(tf, ((0, bpt - bt), (0, dp - d)))

    # Hoisted, pre-halved squared norms (the factor 2 of the Gram expansion is folded
    # into the final scale; min/max commute with a positive scale).  Padded entries
    # get a huge norm so they never win a min.
    xs_half = 0.5 * jnp.sum(xf * xf, axis=1, keepdims=True)          # (bpx, 1)
    ts_half = 0.5 * jnp.sum(tf * tf, axis=1)[None, :]                # (1, bpt)
    if bpx != bx:
        xs_half = jnp.where(jnp.arange(bpx)[:, None] < bx, xs_half, _BIG)
    if bpt != bt:
        ts_half = jnp.where(jnp.arange(bpt)[None, :] < bt, ts_half, _BIG)

    vmem_limit = int(min(max(_vmem_estimate(tm, tn, tk) + (8 << 20), 32 << 20), cap))

    x_spec = pl.BlockSpec((tm, tk), lambda i, j, k: (i, k))
    t_spec = _maybe_buffered_spec((tn, tk), lambda i, j, k: (j, k),
                                  3 if (n_j > 1 or n_k > 1) else 2)

    rowm_p, colm_p = pl.pallas_call(
        _batch_matched_mse_kernel,
        out_shape=(
            jax.ShapeDtypeStruct((n_j, 1, bpx), jnp.float32),   # row-min partials
            jax.ShapeDtypeStruct((n_i, 1, bpt), jnp.float32),   # col-min partials
        ),
        grid=(n_i, n_j, n_k),
        in_specs=[
            pl.BlockSpec((tm, 1), lambda i, j, k: (i, 0)),      # halved ||x||^2
            pl.BlockSpec((1, tn), lambda i, j, k: (0, j)),      # halved ||t||^2
            x_spec,
            t_spec,
        ],
        out_specs=(
            pl.BlockSpec((1, 1, tm), lambda i, j, k: (j, 0, i)),
            pl.BlockSpec((1, 1, tn), lambda i, j, k: (i, 0, j)),
        ),
        scratch_shapes=[pltpu.VMEM((tm, tn), jnp.float32)],
        compiler_params=pltpu.CompilerParams(
            dimension_semantics=("parallel", "parallel", "arbitrary"),
            vmem_limit_bytes=vmem_limit,
        ),
    )(xs_half, ts_half, xf, tf)

    # Combine the tiny per-tile partials in XLA; drop padded rows/cols.
    row_min = jnp.min(rowm_p[:, 0, :bx], axis=0)     # (bx,)
    col_min = jnp.min(colm_p[:, 0, :bt], axis=0)     # (bt,)
    total = jnp.sum(row_min) + jnp.sum(col_min)      # sums of *halved* squared dists

    if reduction == "mean":
        # x2 (un-halve), /D (mean over features), /(bx+bt) (mean over the concat).
        return total * (2.0 / (jnp.float32(d) * jnp.float32(bx + bt)))
    return total * jnp.float32(2.0)


# ----------------------------------------------------------------------------- demo
if __name__ == "__main__":
    key = jax.random.PRNGKey(0)
    k1, k2, k3, k4, k5, k6 = jax.random.split(key, 6)

    # Case 1: tiny (batch, output_dim) -- exercises the small-problem XLA bypass.
    x0 = jax.random.normal(k1, (8, 32), dtype=jnp.float32)
    t0 = jax.random.normal(k2, (8, 32), dtype=jnp.float32)
    l0 = jax.block_until_ready(batch_matched_mse_loss(x0, t0))
    r0 = jax.block_until_ready(_direct_loss(x0, t0))
    assert jnp.allclose(l0, r0, rtol=1e-5, atol=1e-6), (l0, r0)

    # Case 2: Pallas path -- multi-block batch grid (i axis split for megacore).
    x1 = jax.random.normal(k3, (256, 64), dtype=jnp.float32)
    t1 = jax.random.normal(k4, (256, 64), dtype=jnp.float32)
    l1 = jax.block_until_ready(batch_matched_mse_loss(x1, t1))
    r1 = jax.block_until_ready(_direct_loss(x1, t1))
    assert jnp.allclose(l1, r1, rtol=1e-4, atol=1e-5), (l1, r1)

    # Case 3: Pallas path -- batch not a multiple of 128 (pad + mask) and an explicit
    # feature split exercising the K-axis Gram accumulator.
    x2 = 1.5 * jax.random.normal(k5, (200, 256), dtype=jnp.float32) + 0.3
    t2 = 1.5 * jax.random.normal(k6, (200, 256), dtype=jnp.float32) - 0.2
    l2 = jax.block_until_ready(batch_matched_mse_loss(x2, t2, block_k=128))
    r2 = jax.block_until_ready(_direct_loss(x2, t2))
    assert jnp.allclose(l2, r2, rtol=1e-4, atol=1e-5), (l2, r2)

    print("KERNEL_OK")
</pallas_src>

<mosaic_0001>
module attributes {stable_mosaic.version = 11 : i64} {
  func.func @_batch_matched_mse_kernel(%arg0: i32, %arg1: i32, %arg2: i32, %arg3: memref<128x1xf32, #tpu.memory_space<vmem>>, %arg4: memref<1x256xf32, #tpu.memory_space<vmem>>, %arg5: memref<128x64xf32, #tpu.memory_space<vmem>>, %arg6: memref<256x64xf32, #tpu.memory_space<vmem>>, %arg7: memref<1x1x128xf32, #tpu.memory_space<vmem>>, %arg8: memref<1x1x256xf32, #tpu.memory_space<vmem>>, %arg9: memref<128x256xf32, #tpu.memory_space<vmem>>) attributes {dimension_semantics = [#tpu.dimension_semantics<parallel>, #tpu.dimension_semantics<parallel>, #tpu.dimension_semantics<arbitrary>], iteration_bounds = array<i64: 2, 1, 1>, scalar_prefetch = 0 : i64, scratch_operands = 1 : i64, tpu.core_type = #tpu.core_type<tc>, window_params = [{transform_indices = @transform_0, window_bounds = array<i64: 128, 1>}, {transform_indices = @transform_1, window_bounds = array<i64: 1, 256>}, {transform_indices = @transform_2, window_bounds = array<i64: 128, 64>}, {transform_indices = @transform_3, window_bounds = array<i64: 256, 64>}, {transform_indices = @transform_4, window_bounds = array<i64: 1, 1, 128>}, {transform_indices = @transform_5, window_bounds = array<i64: 1, 1, 256>}]} {
    %c0_i32 = arith.constant 0 : i32
    %0 = arith.cmpi eq, %arg2, %c0_i32 : i32
    %1 = arith.extui %0 : i1 to i32
    %c0_i32_0 = arith.constant 0 : i32
    %2 = arith.cmpi ne, %1, %c0_i32_0 : i32
    scf.if %2 {
      %cst_10 = arith.constant 0.000000e+00 : f32
      %12 = vector.broadcast %cst_10 : f32 to vector<128x256xf32>
      %c0_11 = arith.constant 0 : index
      %c0_12 = arith.constant 0 : index
      %13 = vector.load %arg9[%c0_11, %c0_12] : memref<128x256xf32, #tpu.memory_space<vmem>>, vector<128x256xf32>
      tpu.vector_store %arg9[%c0_11, %c0_12], %12 {strides = array<i32>} : memref<128x256xf32, #tpu.memory_space<vmem>>, vector<128x256xf32>,
    } else {
    }
    %c0 = arith.constant 0 : index
    %c0_1 = arith.constant 0 : index
    %3 = vector.load %arg9[%c0, %c0_1] : memref<128x256xf32, #tpu.memory_space<vmem>>, vector<128x256xf32>
    %c0_2 = arith.constant 0 : index
    %c0_3 = arith.constant 0 : index
    %4 = vector.load %arg5[%c0_2, %c0_3] : memref<128x64xf32, #tpu.memory_space<vmem>>, vector<128x64xf32>
    %c0_4 = arith.constant 0 : index
    %c0_5 = arith.constant 0 : index
    %5 = vector.load %arg6[%c0_4, %c0_5] : memref<256x64xf32, #tpu.memory_space<vmem>>, vector<256x64xf32>
    %cst = arith.constant dense<0.000000e+00> : vector<128x256xf32>
    %6 = tpu.matmul %4, %5, %cst {dimension_numbers = #tpu.dot_dimension_numbers<[1], [1], [0], [0], [0, 0, 1, 0], [], []>} : vector<128x64xf32>, vector<256x64xf32>, vector<128x256xf32> -> vector<128x256xf32>
    %7 = arith.addf %3, %6 : vector<128x256xf32>
    %c0_6 = arith.constant 0 : index
    %c0_7 = arith.constant 0 : index
    %8 = vector.load %arg9[%c0_6, %c0_7] : memref<128x256xf32, #tpu.memory_space<vmem>>, vector<128x256xf32>
    tpu.vector_store %arg9[%c0_6, %c0_7], %7 {strides = array<i32>} : memref<128x256xf32, #tpu.memory_space<vmem>>, vector<128x256xf32>,
    %c0_i32_8 = arith.constant 0 : i32
    %9 = arith.cmpi eq, %arg2, %c0_i32_8 : i32
    %10 = arith.extui %9 : i1 to i32
    %c0_i32_9 = arith.constant 0 : i32
    %11 = arith.cmpi ne, %10, %c0_i32_9 : i32
    scf.if %11 {
      %c0_10 = arith.constant 0 : index
      %c0_11 = arith.constant 0 : index
      %12 = vector.load %arg3[%c0_10, %c0_11] : memref<128x1xf32, #tpu.memory_space<vmem>>, vector<128x1xf32>
      %c0_12 = arith.constant 0 : index
      %c0_13 = arith.constant 0 : index
      %13 = vector.load %arg4[%c0_12, %c0_13] : memref<1x256xf32, #tpu.memory_space<vmem>>, vector<1x256xf32>
      %14 = vector.broadcast %12 : vector<128x1xf32> to vector<128x256xf32>
      %15 = vector.broadcast %13 : vector<1x256xf32> to vector<128x256xf32>
      %16 = arith.addf %14, %15 : vector<128x256xf32>
      %c0_14 = arith.constant 0 : index
      %c0_15 = arith.constant 0 : index
      %17 = vector.load %arg9[%c0_14, %c0_15] : memref<128x256xf32, #tpu.memory_space<vmem>>, vector<128x256xf32>
      %18 = arith.subf %16, %17 : vector<128x256xf32>
      %cst_16 = arith.constant 0.000000e+00 : f32
      %19 = vector.broadcast %cst_16 : f32 to vector<128x256xf32>
      %20 = arith.maximumf %18, %19 : vector<128x256xf32>
      %cst_17 = arith.constant dense<0x7F800000> : vector<128xf32>
      %21 = vector.multi_reduction <minimumf>, %20, %cst_17 [1] : vector<128x256xf32> to vector<128xf32>
      %22 = vector.shape_cast %21 : vector<128xf32> to vector<1x1x128xf32>
      %c0_18 = arith.constant 0 : index
      %c0_19 = arith.constant 0 : index
      %c0_20 = arith.constant 0 : index
      %23 = vector.load %arg7[%c0_18, %c0_19, %c0_20] : memref<1x1x128xf32, #tpu.memory_space<vmem>>, vector<1x1x128xf32>
      tpu.vector_store %arg7[%c0_18, %c0_19, %c0_20], %22 {strides = array<i32>} : memref<1x1x128xf32, #tpu.memory_space<vmem>>, vector<1x1x128xf32>,
      %cst_21 = arith.constant dense<0x7F800000> : vector<256xf32>
      %24 = vector.multi_reduction <minimumf>, %20, %cst_21 [0] : vector<128x256xf32> to vector<256xf32>
      %25 = vector.shape_cast %24 : vector<256xf32> to vector<1x1x256xf32>
      %c0_22 = arith.constant 0 : index
      %c0_23 = arith.constant 0 : index
      %c0_24 = arith.constant 0 : index
      %26 = vector.load %arg8[%c0_22, %c0_23, %c0_24] : memref<1x1x256xf32, #tpu.memory_space<vmem>>, vector<1x1x256xf32>
      tpu.vector_store %arg8[%c0_22, %c0_23, %c0_24], %25 {strides = array<i32>} : memref<1x1x256xf32, #tpu.memory_space<vmem>>, vector<1x1x256xf32>,
    } else {
    }
    return
  }
  func.func @transform_0(%arg0: i32, %arg1: i32, %arg2: i32) -> (i32, i32) {
    %c0_i32 = arith.constant 0 : i32
    %c0_i32_0 = arith.constant 0 : i32
    return %arg0, %c0_i32 : i32, i32
  }
  func.func @transform_1(%arg0: i32, %arg1: i32, %arg2: i32) -> (i32, i32) {
    %c0_i32 = arith.constant 0 : i32
    %c0_i32_0 = arith.constant 0 : i32
    return %c0_i32, %arg1 : i32, i32
  }
  func.func @transform_2(%arg0: i32, %arg1: i32, %arg2: i32) -> (i32, i32) {
    %c0_i32 = arith.constant 0 : i32
    return %arg0, %arg2 : i32, i32
  }
  func.func @transform_3(%arg0: i32, %arg1: i32, %arg2: i32) -> (i32, i32) {
    %c0_i32 = arith.constant 0 : i32
    return %arg1, %arg2 : i32, i32
  }
  func.func @transform_4(%arg0: i32, %arg1: i32, %arg2: i32) -> (i32, i32, i32) {
    %c0_i32 = arith.constant 0 : i32
    %c0_i32_0 = arith.constant 0 : i32
    return %arg1, %c0_i32, %arg0 : i32, i32, i32
  }
  func.func @transform_5(%arg0: i32, %arg1: i32, %arg2: i32) -> (i32, i32, i32) {
    %c0_i32 = arith.constant 0 : i32
    %c0_i32_0 = arith.constant 0 : i32
    return %arg0, %c0_i32, %arg1 : i32, i32, i32
  }
}

</mosaic_0001>

<llo_original>
// kernel: tpu_custom_call.1
$region0: #{tpu_custom_call.1}
  #allocation0 [shape = 'u32[]', space=smem, size = 0x4, offset = 0x4, fixed_abs, tag = 'smem constant byte address 0x4 - core index']
  #allocation1 [shape = 'u32[72,128]{1,0:T(1,128)}', space=vmem, size = 0x9000, scoped, tag = 'internal scratch']
  #allocation2 [shape = 'f32[128,256]{1,0:T(8,128)}', space=vmem, size = 0x20000, scoped, tag = 'scratch operand']
  %s0 = inlined_call_operand.vmem [shape: f32[256,1], index: 0, kind: input, shape index: {}]
  %s1 = inlined_call_operand.vmem [shape: f32[1,256], index: 1, kind: input, shape index: {}]
  %s2 = inlined_call_operand.vmem [shape: f32[256,64], index: 2, kind: input, shape index: {}]
  %s3 = inlined_call_operand.vmem [shape: f32[256,64], index: 3, kind: input, shape index: {}]
  %s4 = inlined_call_operand.hbm [shape: f32[1,1,256], index: 4, kind: output, shape index: {0}]
  %s5 = inlined_call_operand.hbm [shape: f32[2,1,256], index: 5, kind: output, shape index: {1}]
  %6 = xla_tuple %s4, %s5
  %s7 = sld [smem:[#allocation0]]
  $region65: #{tpu_custom_call.1} parent=0
    _
  %s9 = ssub.s32 1, %s7
  %s10 = scalar_select 0, %s9, %s7
  $region1: #{tpu_custom_call.1} parent=0
    #allocation3 [shape = 'u8[1024]{0}', space=vmem, size = 0x400, scoped, tag = 'output window, operand 0']
    #allocation4 [shape = 's32[2]{0}', space=sflag, size = 0x8, scoped, tag = 'scoped memory for tpu_custom_call.1']
    #allocation5 [shape = 'u8[2048]{0}', space=vmem, size = 0x800, scoped, tag = 'output window, operand 1']
    #allocation6 [shape = 's32[2]{0}', space=sflag, size = 0x8, scoped, tag = 'scoped memory for tpu_custom_call.1']
    %11 = vsyncpa [#allocation4], 0
    %s12 = scalar_lea.sflag [#allocation4], 1
    %13 = vsyncpa %s12, 0
    %14 = vsyncpa [#allocation6], 0
    %s15 = scalar_lea.sflag [#allocation6], 1
    %16 = vsyncpa %s15, 0
    loop: start=0, step=1, limit=4
    $region2: #{tpu_custom_call.1} parent=1 // loop_pre_header
      _
    $region3: #{tpu_custom_call.1} parent=1 // loop_header
      %s18 = sphi 0, %s22
      %p19 = scmp.ge.s32.totalorder %s18, 4
      %s25 = sphi 0, %s44
      %s26 = sphi 0, %s40
      %s27 = sphi 0, %s36
      %s28 = sphi 0, %s25
      %s29 = sphi 0, %s26
      %s30 = sphi 0, %s27
      %s31 = sphi 0, %s28
      %s32 = sphi 0, %s29
      %s33 = sphi 0, %s30
      %s47 = sphi 0, %s49
      %s50 = sphi 0, %s47
      %s51 = sphi 0, %s50
      %s67 = sphi 0, %s51
      %s73 = sphi 0, %s75
      %s76 = sphi 0, %s73
      %s77 = sphi 0, %s76
      %s93 = sphi 0, %s77
      %s101 = sphi 0, %s103
      %s104 = sphi 0, %s101
      %s105 = sphi 0, %s104
      %s121 = sphi 0, %s105
      %s129 = sphi 0, %s131
      %s132 = sphi 0, %s129
      %s133 = sphi 0, %s132
      %s149 = sphi 0, %s133
      %s157 = sphi 0, %s159
      %s160 = sphi 0, %s157
      %s161 = sphi 0, %s160
      %s177 = sphi 0, %s161
      %s185 = sphi 0, %s187
      %s188 = sphi 0, %s185
      %s189 = sphi 0, %s188
      %s205 = sphi 0, %s189
    $region4: #{tpu_custom_call.1} parent=1 // loop_header_branch
      %21 = sbr.rel (%p19) target = $region8
    $region5: #{tpu_custom_call.1} parent=1 // loop_body
      %s23 = ssub.s32 %s18, 1
      %s24 = ssub.s32 %s18, 2
      %s34 = sadd.s32 1, %s27
      %p35 = scmp.ge.s32.totalorder %s34, 1
      %s36 = scalar_select %p35, 0, %s34
      %s37 = sadd.s32 1, %s26
      %s38 = scalar_select %p35, %s37, %s26
      %p39 = scmp.ge.s32.totalorder %s38, 1
      %s40 = scalar_select %p39, 0, %s38
      %s41 = sadd.s32 1, %s25
      %s42 = scalar_select %p39, %s41, %s25
      %p43 = scmp.ge.s32.totalorder %s42, 2
      %s44 = scalar_select %p43, 0, %s42
      %s45 = ssub.s32 %s25, %s44
      %p46 = scmp.eq.s32.totalorder %s45, 0
      %s48 = sadd.s32 %s47, 1
      %s49 = scalar_select %p46, %s47, %s48
      %p52 = pneg %p46
      %p53 = scmp.eq.s32.totalorder %s18, 1
      %p54 = por %p52, %p53
      %p55 = scmp.ne.s32.totalorder %s47, %s50
      %p56 = scmp.eq.s32.totalorder %s18, 0
      %p57 = por %p55, %p56
      %p58 = scmp.ne.s32.totalorder %s47, %s50
      %p59 = scmp.eq.s32.totalorder %s23, 1
      %p60 = por %p58, %p59
      %p61 = scmp.ne.s32.totalorder %s50, %s51
      %p62 = scmp.eq.s32.totalorder %s23, 0
      %p63 = por %p61, %p62
      %p64 = scmp.ne.s32.totalorder %s50, %s51
      %p65 = scmp.eq.s32.totalorder %s24, 1
      %p66 = por %p64, %p65
      %p68 = scmp.ne.s32.totalorder %s51, %s67
      %p69 = scmp.eq.s32.totalorder %s24, 0
      %p70 = por %p68, %p69
      %s71 = ssub.s32 %s26, %s40
      %p72 = scmp.eq.s32.totalorder %s71, 0
      %s74 = sadd.s32 %s73, 1
      %s75 = scalar_select %p72, %s73, %s74
      %p78 = pneg %p72
      %p79 = scmp.eq.s32.totalorder %s18, 1
      %p80 = por %p78, %p79
      %p81 = scmp.ne.s32.totalorder %s73, %s76
      %p82 = scmp.eq.s32.totalorder %s18, 0
      %p83 = por %p81, %p82
      %p84 = scmp.ne.s32.totalorder %s73, %s76
      %p85 = scmp.eq.s32.totalorder %s23, 1
      %p86 = por %p84, %p85
      %p87 = scmp.ne.s32.totalorder %s76, %s77
      %p88 = scmp.eq.s32.totalorder %s23, 0
      %p89 = por %p87, %p88
      %p90 = scmp.ne.s32.totalorder %s76, %s77
      %p91 = scmp.eq.s32.totalorder %s24, 1
      %p92 = por %p90, %p91
      %p94 = scmp.ne.s32.totalorder %s77, %s93
      %p95 = scmp.eq.s32.totalorder %s24, 0
      %p96 = por %p94, %p95
      %s97 = ssub.s32 %s25, %s44
      %s98 = ssub.s32 %s27, %s36
      %s99 = sor.u32 %s97, %s98
      %p100 = scmp.eq.s32.totalorder %s99, 0
      %s102 = sadd.s32 %s101, 1
      %s103 = scalar_select %p100, %s101, %s102
      %p106 = pneg %p100
      %p107 = scmp.eq.s32.totalorder %s18, 1
      %p108 = por %p106, %p107
      %p109 = scmp.ne.s32.totalorder %s101, %s104
      %p110 = scmp.eq.s32.totalorder %s18, 0
      %p111 = por %p109, %p110
      %p112 = scmp.ne.s32.totalorder %s101, %s104
      %p113 = scmp.eq.s32.totalorder %s23, 1
      %p114 = por %p112, %p113
      %p115 = scmp.ne.s32.totalorder %s104, %s105
      %p116 = scmp.eq.s32.totalorder %s23, 0
      %p117 = por %p115, %p116
      %p118 = scmp.ne.s32.totalorder %s104, %s105
      %p119 = scmp.eq.s32.totalorder %s24, 1
      %p120 = por %p118, %p119
      %p122 = scmp.ne.s32.totalorder %s105, %s121
      %p123 = scmp.eq.s32.totalorder %s24, 0
      %p124 = por %p122, %p123
      %s125 = ssub.s32 %s26, %s40
      %s126 = ssub.s32 %s27, %s36
      %s127 = sor.u32 %s125, %s126
      %p128 = scmp.eq.s32.totalorder %s127, 0
      %s130 = sadd.s32 %s129, 1
      %s131 = scalar_select %p128, %s129, %s130
      %p134 = pneg %p128
      %p135 = scmp.eq.s32.totalorder %s18, 1
      %p136 = por %p134, %p135
      %p137 = scmp.ne.s32.totalorder %s129, %s132
      %p138 = scmp.eq.s32.totalorder %s18, 0
      %p139 = por %p137, %p138
      %p140 = scmp.ne.s32.totalorder %s129, %s132
      %p141 = scmp.eq.s32.totalorder %s23, 1
      %p142 = por %p140, %p141
      %p143 = scmp.ne.s32.totalorder %s132, %s133
      %p144 = scmp.eq.s32.totalorder %s23, 0
      %p145 = por %p143, %p144
      %p146 = scmp.ne.s32.totalorder %s132, %s133
      %p147 = scmp.eq.s32.totalorder %s24, 1
      %p148 = por %p146, %p147
      %p150 = scmp.ne.s32.totalorder %s133, %s149
      %p151 = scmp.eq.s32.totalorder %s24, 0
      %p152 = por %p150, %p151
      %s153 = ssub.s32 %s26, %s40
      %s154 = ssub.s32 %s25, %s44
      %s155 = sor.u32 %s153, %s154
      %p156 = scmp.eq.s32.totalorder %s155, 0
      %s158 = sadd.s32 %s157, 1
      %s159 = scalar_select %p156, %s157, %s158
      %p162 = pneg %p156
      %p163 = scmp.eq.s32.totalorder %s18, 1
      %p164 = por %p162, %p163
      %p165 = scmp.ne.s32.totalorder %s157, %s160
      %p166 = scmp.eq.s32.totalorder %s18, 0
      %p167 = por %p165, %p166
      %p168 = scmp.ne.s32.totalorder %s157, %s160
      %p169 = scmp.eq.s32.totalorder %s23, 1
      %p170 = por %p168, %p169
      %p171 = scmp.ne.s32.totalorder %s160, %s161
      %p172 = scmp.eq.s32.totalorder %s23, 0
      %p173 = por %p171, %p172
      %p174 = scmp.ne.s32.totalorder %s160, %s161
      %p175 = scmp.eq.s32.totalorder %s24, 1
      %p176 = por %p174, %p175
      %p178 = scmp.ne.s32.totalorder %s161, %s177
      %p179 = scmp.eq.s32.totalorder %s24, 0
      %p180 = por %p178, %p179
      %s181 = ssub.s32 %s25, %s44
      %s182 = ssub.s32 %s26, %s40
      %s183 = sor.u32 %s181, %s182
      %p184 = scmp.eq.s32.totalorder %s183, 0
      %s186 = sadd.s32 %s185, 1
      %s187 = scalar_select %p184, %s185, %s186
      %p190 = pneg %p184
      %p191 = scmp.eq.s32.totalorder %s18, 1
      %p192 = por %p190, %p191
      %p193 = scmp.ne.s32.totalorder %s185, %s188
      %p194 = scmp.eq.s32.totalorder %s18, 0
      %p195 = por %p193, %p194
      %p196 = scmp.ne.s32.totalorder %s185, %s188
      %p197 = scmp.eq.s32.totalorder %s23, 1
      %p198 = por %p196, %p197
      %p199 = scmp.ne.s32.totalorder %s188, %s189
      %p200 = scmp.eq.s32.totalorder %s23, 0
      %p201 = por %p199, %p200
      %p202 = scmp.ne.s32.totalorder %s188, %s189
      %p203 = scmp.eq.s32.totalorder %s24, 1
      %p204 = por %p202, %p203
      %p206 = scmp.ne.s32.totalorder %s189, %s205
      %p207 = scmp.eq.s32.totalorder %s24, 0
      %p208 = por %p206, %p207
      %p209 = scmp.le.s32.totalorder 1, %s18
      %p210 = scmp.lt.s32.totalorder %s18, 3
      %p211 = pnand %p209, %p210
      %p212 = pneg %p211
      // Predicated region
      $region9: #{tpu_custom_call.1} parent=5 // pred_check
        _
      $region10: #{tpu_custom_call.1} parent=5 // pred_check_branch
        %214 = sbr.rel (%p211) target = $region12
      $region11: #{tpu_custom_call.1} parent=5 // pred_region
        %s215 = ssub.s32 %s18, 1
        // Predicated region
        $region13: #{tpu_custom_call.1} parent=11 // pred_check
          %p216 = pneg %p89
        $region14: #{tpu_custom_call.1} parent=11 // pred_check_branch
          %218 = sbr.rel (%p216) target = $region16
        $region15: #{tpu_custom_call.1} parent=11 // pred_region
          %s219 = smul.u32 2, %s29
          %p220 = scmp.lt.s32.totalorder %s219, 1
          %s221 = scalar_select %p220, %s219, 1
          %s222 = scalar_lea.vmem %s1, %s221
          %s223 = smul.u32 2, %s29
        $region16: #{tpu_custom_call.1} parent=11 // pred_fallthru
          _
        // Predicated region
        $region17: #{tpu_custom_call.1} parent=11 // pred_check
          %p224 = pneg %p145
        $region18: #{tpu_custom_call.1} parent=11 // pred_check_branch
          %226 = sbr.rel (%p224) target = $region20
        $region19: #{tpu_custom_call.1} parent=11 // pred_region
          %s227 = smul.u32 32, %s29
          %p228 = scmp.lt.s32.totalorder %s227, 31
          %s229 = scalar_select %p228, %s227, 31
          %p230 = scmp.lt.s32.totalorder %s30, 0
          %s231 = scalar_select %p230, %s30, 0
          %s232 = sadd.s32 %s231, %s229
          %s233 = smul.addr %s232, 8
          %s234 = scalar_lea.vmem %s3, %s233
          %s235 = smul.u32 32, %s29
        $region20: #{tpu_custom_call.1} parent=11 // pred_fallthru
          _
      $region12: #{tpu_custom_call.1} parent=5 // pred_fallthru
        _
      %p236 = scmp.lt.s32.totalorder %s18, 2
      // Predicated region
      $region21: #{tpu_custom_call.1} parent=5 // pred_check
        %p237 = pneg %p236
      $region22: #{tpu_custom_call.1} parent=5 // pred_check_branch
        %239 = sbr.rel (%p237) target = $region24
      $region23: #{tpu_custom_call.1} parent=5 // pred_region
        // Predicated region
        $region25: #{tpu_custom_call.1} parent=23 // pred_check
          %p240 = pneg %p57
        $region26: #{tpu_custom_call.1} parent=23 // pred_check_branch
          %242 = sbr.rel (%p240) target = $region28
        $region27: #{tpu_custom_call.1} parent=23 // pred_region
          %s243 = smul.u32 16, %s25
          %p244 = scmp.lt.s32.totalorder %s243, 31
          %s245 = scalar_select %p244, %s243, 31
          %s246 = smul.addr %s245, 8
          %s247 = scalar_lea.vmem %s0, %s246
          %s248 = smul.u32 16, %s25
        $region28: #{tpu_custom_call.1} parent=23 // pred_fallthru
          _
        // Predicated region
        $region29: #{tpu_custom_call.1} parent=23 // pred_check
          %p249 = pneg %p111
        $region30: #{tpu_custom_call.1} parent=23 // pred_check_branch
          %251 = sbr.rel (%p249) target = $region32
        $region31: #{tpu_custom_call.1} parent=23 // pred_region
          %s252 = smul.u32 16, %s25
          %p253 = scmp.lt.s32.totalorder %s252, 31
          %s254 = scalar_select %p253, %s252, 31
          %p255 = scmp.lt.s32.totalorder %s27, 0
          %s256 = scalar_select %p255, %s27, 0
          %s257 = sadd.s32 %s256, %s254
          %s258 = smul.addr %s257, 8
          %s259 = scalar_lea.vmem %s2, %s258
          %s260 = smul.u32 16, %s25
        $region32: #{tpu_custom_call.1} parent=23 // pred_fallthru
          _
      $region24: #{tpu_custom_call.1} parent=5 // pred_fallthru
        _
      %p261 = scmp.le.s32.totalorder 1, %s18
      %p262 = scmp.lt.s32.totalorder %s18, 3
      %p263 = pnand %p261, %p262
      %p264 = pneg %p263
      // Predicated region
      $region33: #{tpu_custom_call.1} parent=5 // pred_check
        _
      $region34: #{tpu_custom_call.1} parent=5 // pred_check_branch
        %266 = sbr.rel (%p263) target = $region36
      $region35: #{tpu_custom_call.1} parent=5 // pred_region
        %s267 = ssub.s32 %s18, 1
        %s268 = smul.u32 16, %s28
        %p269 = scmp.lt.s32.totalorder %s268, 31
        %s270 = scalar_select %p269, %s268, 31
        %s271 = smul.addr %s270, 8
        %s272 = scalar_lea.vmem %s0, %s271
        %p273 = pneg %p63
        %p274 = pneg %p60
        %s275 = smul.u32 2, %s29
        %p276 = scmp.lt.s32.totalorder %s275, 1
        %s277 = scalar_select %p276, %s275, 1
        %s278 = scalar_lea.vmem %s1, %s277
        %p279 = pneg %p89
        %p280 = pneg %p86
        %s281 = smul.u32 16, %s28
        %p282 = scmp.lt.s32.totalorder %s281, 31
        %s283 = scalar_select %p282, %s281, 31
        %p284 = scmp.lt.s32.totalorder %s30, 0
        %s285 = scalar_select %p284, %s30, 0
        %s286 = sadd.s32 %s285, %s283
        %s287 = smul.addr %s286, 8
        %s288 = scalar_lea.vmem %s2, %s287
        %p289 = pneg %p117
        %p290 = pneg %p114
        %s291 = smul.u32 32, %s29
        %p292 = scmp.lt.s32.totalorder %s291, 31
        %s293 = scalar_select %p292, %s291, 31
        %p294 = scmp.lt.s32.totalorder %s30, 0
        %s295 = scalar_select %p294, %s30, 0
        %s296 = sadd.s32 %s295, %s293
        %s297 = smul.addr %s296, 8
        %s298 = scalar_lea.vmem %s3, %s297
        %p299 = pneg %p145
        %p300 = pneg %p142
        %p301 = pneg %p173
        %p302 = pneg %p170
        %s303 = sand.u32 %s160, 1
        %s304 = scalar_lea.sflag [#allocation4], %s303
        %s305 = sand.u32 %s160, 1
        %s306 = scalar_lea.vmem [#allocation3], %s305
        %p307 = pneg %p201
        %p308 = pneg %p198
        %s309 = sand.u32 %s188, 1
        %s310 = scalar_lea.sflag [#allocation6], %s309
        %s311 = sand.u32 %s188, 1
        %s312 = smul.addr %s311, 2
        %s313 = scalar_lea.vmem [#allocation5], %s312
        %s314 = smul.u32 16, %s28
        %p315 = scmp.lt.s32.totalorder %s314, 31
        %s316 = scalar_select %p315, %s314, 31
        %s317 = smul.addr %s316, 8
        %s318 = scalar_lea.vmem %s0, %s317
        %s319 = smul.u32 16, %s28
        %s320 = smul.u32 2, %s29
        %p321 = scmp.lt.s32.totalorder %s320, 1
        %s322 = scalar_select %p321, %s320, 1
        %s323 = scalar_lea.vmem %s1, %s322
        %s324 = smul.u32 2, %s29
        %s325 = smul.u32 16, %s28
        %p326 = scmp.lt.s32.totalorder %s325, 31
        %s327 = scalar_select %p326, %s325, 31
        %p328 = scmp.lt.s32.totalorder %s30, 0
        %s329 = scalar_select %p328, %s30, 0
        %s330 = sadd.s32 %s329, %s327
        %s331 = smul.addr %s330, 8
        %s332 = scalar_lea.vmem %s2, %s331
        %s333 = smul.u32 16, %s28
        %s334 = smul.u32 32, %s29
        %p335 = scmp.lt.s32.totalorder %s334, 31
        %s336 = scalar_select %p335, %s334, 31
        %p337 = scmp.lt.s32.totalorder %s30, 0
        %s338 = scalar_select %p337, %s30, 0
        %s339 = sadd.s32 %s338, %s336
        %s340 = smul.addr %s339, 8
        %s341 = scalar_lea.vmem %s3, %s340
        %s342 = smul.u32 32, %s29
        %s343 = smul.u32 2, %s29
        %p344 = scmp.eq.s32.totalorder %s30, 0
        // Predicated region
        $region37: #{tpu_custom_call.1} parent=35 // pred_check
          %p345 = pneg %p344
        $region38: #{tpu_custom_call.1} parent=35 // pred_check_branch
          %347 = sbr.rel (%p345) target = $region40
        $region39: #{tpu_custom_call.1} parent=35 // pred_region
          %348 = vst [vmem:[#allocation2] sm:$0xff] 0.0
          %349 = vst [vmem:[#allocation2 + $0x8] sm:$0xff] 0.0
          %350 = vst [vmem:[#allocation2 + $0x10] sm:$0xff] 0.0
          %351 = vst [vmem:[#allocation2 + $0x18] sm:$0xff] 0.0
          %352 = vst [vmem:[#allocation2 + $0x20] sm:$0xff] 0.0
          %353 = vst [vmem:[#allocation2 + $0x28] sm:$0xff] 0.0
          %354 = vst [vmem:[#allocation2 + $0x30] sm:$0xff] 0.0
          %355 = vst [vmem:[#allocation2 + $0x38] sm:$0xff] 0.0
          %356 = vst [vmem:[#allocation2 + $0x40] sm:$0xff] 0.0
          %357 = vst [vmem:[#allocation2 + $0x48] sm:$0xff] 0.0
          %358 = vst [vmem:[#allocation2 + $0x50] sm:$0xff] 0.0
          %359 = vst [vmem:[#allocation2 + $0x58] sm:$0xff] 0.0
          %360 = vst [vmem:[#allocation2 + $0x60] sm:$0xff] 0.0
          %361 = vst [vmem:[#allocation2 + $0x68] sm:$0xff] 0.0
          %362 = vst [vmem:[#allocation2 + $0x70] sm:$0xff] 0.0
          %363 = vst [vmem:[#allocation2 + $0x78] sm:$0xff] 0.0
          %364 = vst [vmem:[#allocation2 + $0x80] sm:$0xff] 0.0
          %365 = vst [vmem:[#allocation2 + $0x88] sm:$0xff] 0.0
          %366 = vst [vmem:[#allocation2 + $0x90] sm:$0xff] 0.0
          %367 = vst [vmem:[#allocation2 + $0x98] sm:$0xff] 0.0
          %368 = vst [vmem:[#allocation2 + $0xa0] sm:$0xff] 0.0
          %369 = vst [vmem:[#allocation2 + $0xa8] sm:$0xff] 0.0
          %370 = vst [vmem:[#allocation2 + $0xb0] sm:$0xff] 0.0
          %371 = vst [vmem:[#allocation2 + $0xb8] sm:$0xff] 0.0
          %372 = vst [vmem:[#allocation2 + $0xc0] sm:$0xff] 0.0
          %373 = vst [vmem:[#allocation2 + $0xc8] sm:$0xff] 0.0
          %374 = vst [vmem:[#allocation2 + $0xd0] sm:$0xff] 0.0
          %375 = vst [vmem:[#allocation2 + $0xd8] sm:$0xff] 0.0
          %376 = vst [vmem:[#allocation2 + $0xe0] sm:$0xff] 0.0
          %377 = vst [vmem:[#allocation2 + $0xe8] sm:$0xff] 0.0
          %378 = vst [vmem:[#allocation2 + $0xf0] sm:$0xff] 0.0
          %379 = vst [vmem:[#allocation2 + $0xf8] sm:$0xff] 0.0
        $region40: #{tpu_custom_call.1} parent=35 // pred_fallthru
          _
        %v380 = vld [vmem:[#allocation2] sm:$0xff]
        %v381 = vld [vmem:[#allocation2 + $0x8] sm:$0xff]
        %v382 = vld [vmem:[#allocation2 + $0x10] sm:$0xff]
        %v383 = vld [vmem:[#allocation2 + $0x18] sm:$0xff]
        %v384 = vld [vmem:[#allocation2 + $0x20] sm:$0xff]
        %v385 = vld [vmem:[#allocation2 + $0x28] sm:$0xff]
        %v386 = vld [vmem:[#allocation2 + $0x30] sm:$0xff]
        %v387 = vld [vmem:[#allocation2 + $0x38] sm:$0xff]
        %v388 = vld [vmem:[#allocation2 + $0x40] sm:$0xff]
        %v389 = vld [vmem:[#allocation2 + $0x48] sm:$0xff]
        %v390 = vld [vmem:[#allocation2 + $0x50] sm:$0xff]
        %v391 = vld [vmem:[#allocation2 + $0x58] sm:$0xff]
        %v392 = vld [vmem:[#allocation2 + $0x60] sm:$0xff]
        %v393 = vld [vmem:[#allocation2 + $0x68] sm:$0xff]
        %v394 = vld [vmem:[#allocation2 + $0x70] sm:$0xff]
        %v395 = vld [vmem:[#allocation2 + $0x78] sm:$0xff]
        %v396 = vld [vmem:[#allocation2 + $0x80] sm:$0xff]
        %v397 = vld [vmem:[#allocation2 + $0x88] sm:$0xff]
        %v398 = vld [vmem:[#allocation2 + $0x90] sm:$0xff]
        %v399 = vld [vmem:[#allocation2 + $0x98] sm:$0xff]
        %v400 = vld [vmem:[#allocation2 + $0xa0] sm:$0xff]
        %v401 = vld [vmem:[#allocation2 + $0xa8] sm:$0xff]
        %v402 = vld [vmem:[#allocation2 + $0xb0] sm:$0xff]
        %v403 = vld [vmem:[#allocation2 + $0xb8] sm:$0xff]
        %v404 = vld [vmem:[#allocation2 + $0xc0] sm:$0xff]
        %v405 = vld [vmem:[#allocation2 + $0xc8] sm:$0xff]
        %v406 = vld [vmem:[#allocation2 + $0xd0] sm:$0xff]
        %v407 = vld [vmem:[#allocation2 + $0xd8] sm:$0xff]
        %v408 = vld [vmem:[#allocation2 + $0xe0] sm:$0xff]
        %v409 = vld [vmem:[#allocation2 + $0xe8] sm:$0xff]
        %v410 = vld [vmem:[#allocation2 + $0xf0] sm:$0xff]
        %v411 = vld [vmem:[#allocation2 + $0xf8] sm:$0xff]
        %v412 = vld [vmem:[%s332] sm:$0xff]
        %v413 = vld [vmem:[%s332 + $0x8] sm:$0xff]
        %v414 = vld [vmem:[%s332 + $0x10] sm:$0xff]
        %v415 = vld [vmem:[%s332 + $0x18] sm:$0xff]
        %v416 = vld [vmem:[%s332 + $0x20] sm:$0xff]
        %v417 = vld [vmem:[%s332 + $0x28] sm:$0xff]
        %v418 = vld [vmem:[%s332 + $0x30] sm:$0xff]
        %v419 = vld [vmem:[%s332 + $0x38] sm:$0xff]
        %v420 = vld [vmem:[%s332 + $0x40] sm:$0xff]
        %v421 = vld [vmem:[%s332 + $0x48] sm:$0xff]
        %v422 = vld [vmem:[%s332 + $0x50] sm:$0xff]
        %v423 = vld [vmem:[%s332 + $0x58] sm:$0xff]
        %v424 = vld [vmem:[%s332 + $0x60] sm:$0xff]
        %v425 = vld [vmem:[%s332 + $0x68] sm:$0xff]
        %v426 = vld [vmem:[%s332 + $0x70] sm:$0xff]
        %v427 = vld [vmem:[%s332 + $0x78] sm:$0xff]
        %v428 = vld [vmem:[%s341] sm:$0xff]
        %v429 = vld [vmem:[%s341 + $0x8] sm:$0xff]
        %v430 = vld [vmem:[%s341 + $0x10] sm:$0xff]
        %v431 = vld [vmem:[%s341 + $0x18] sm:$0xff]
        %v432 = vld [vmem:[%s341 + $0x20] sm:$0xff]
        %v433 = vld [vmem:[%s341 + $0x28] sm:$0xff]
        %v434 = vld [vmem:[%s341 + $0x30] sm:$0xff]
        %v435 = vld [vmem:[%s341 + $0x38] sm:$0xff]
        %v436 = vld [vmem:[%s341 + $0x40] sm:$0xff]
        %v437 = vld [vmem:[%s341 + $0x48] sm:$0xff]
        %v438 = vld [vmem:[%s341 + $0x50] sm:$0xff]
        %v439 = vld [vmem:[%s341 + $0x58] sm:$0xff]
        %v440 = vld [vmem:[%s341 + $0x60] sm:$0xff]
        %v441 = vld [vmem:[%s341 + $0x68] sm:$0xff]
        %v442 = vld [vmem:[%s341 + $0x70] sm:$0xff]
        %v443 = vld [vmem:[%s341 + $0x78] sm:$0xff]
        %v444 = vld [vmem:[%s341 + $0x80] sm:$0xff]
        %v445 = vld [vmem:[%s341 + $0x88] sm:$0xff]
        %v446 = vld [vmem:[%s341 + $0x90] sm:$0xff]
        %v447 = vld [vmem:[%s341 + $0x98] sm:$0xff]
        %v448 = vld [vmem:[%s341 + $0xa0] sm:$0xff]
        %v449 = vld [vmem:[%s341 + $0xa8] sm:$0xff]
        %v450 = vld [vmem:[%s341 + $0xb0] sm:$0xff]
        %v451 = vld [vmem:[%s341 + $0xb8] sm:$0xff]
        %v452 = vld [vmem:[%s341 + $0xc0] sm:$0xff]
        %v453 = vld [vmem:[%s341 + $0xc8] sm:$0xff]
        %v454 = vld [vmem:[%s341 + $0xd0] sm:$0xff]
        %v455 = vld [vmem:[%s341 + $0xd8] sm:$0xff]
        %v456 = vld [vmem:[%s341 + $0xe0] sm:$0xff]
        %v457 = vld [vmem:[%s341 + $0xe8] sm:$0xff]
        %v458 = vld [vmem:[%s341 + $0xf0] sm:$0xff]
        %v459 = vld [vmem:[%s341 + $0xf8] sm:$0xff]
        %vm460 = vcmask 523264
        %v462 = vsel %vm460, %v412, 0
        %v465 = vsel %vm460, %v413, 0
        %v468 = vsel %vm460, %v414, 0
        %v471 = vsel %vm460, %v415, 0
        %v474 = vsel %vm460, %v416, 0
        %v477 = vsel %vm460, %v417, 0
        %v480 = vsel %vm460, %v418, 0
        %v483 = vsel %vm460, %v419, 0
        %v486 = vsel %vm460, %v420, 0
        %v489 = vsel %vm460, %v421, 0
        %v492 = vsel %vm460, %v422, 0
        %v495 = vsel %vm460, %v423, 0
        %v498 = vsel %vm460, %v424, 0
        %v501 = vsel %vm460, %v425, 0
        %v504 = vsel %vm460, %v426, 0
        %v507 = vsel %vm460, %v427, 0
        %v510 = vsel %vm460, %v428, 0
        %v513 = vsel %vm460, %v429, 0
        %v516 = vsel %vm460, %v430, 0
        %v519 = vsel %vm460, %v431, 0
        %v522 = vsel %vm460, %v432, 0
        %v525 = vsel %vm460, %v433, 0
        %v528 = vsel %vm460, %v434, 0
        %v531 = vsel %vm460, %v435, 0
        %v534 = vsel %vm460, %v436, 0
        %v537 = vsel %vm460, %v437, 0
        %v540 = vsel %vm460, %v438, 0
        %v543 = vsel %vm460, %v439, 0
        %v546 = vsel %vm460, %v440, 0
        %v549 = vsel %vm460, %v441, 0
        %v552 = vsel %vm460, %v442, 0
        %v555 = vsel %vm460, %v443, 0
        %v558 = vsel %vm460, %v444, 0
        %v561 = vsel %vm460, %v445, 0
        %v564 = vsel %vm460, %v446, 0
        %v567 = vsel %vm460, %v447, 0
        %v570 = vsel %vm460, %v448, 0
        %v573 = vsel %vm460, %v449, 0
        %v576 = vsel %vm460, %v450, 0
        %v579 = vsel %vm460, %v451, 0
        %v582 = vsel %vm460, %v452, 0
        %v585 = vsel %vm460, %v453, 0
        %v588 = vsel %vm460, %v454, 0
        %v591 = vsel %vm460, %v455, 0
        %v594 = vsel %vm460, %v456, 0
        %v597 = vsel %vm460, %v457, 0
        %v600 = vsel %vm460, %v458, 0
        %v603 = vsel %vm460, %v459, 0
        %605 = vmatpush.xpose.msra.mxu0 %v555
        %606 = vmatpush.xpose.msra.mxu0 %v552
        %607 = vmatpush.xpose.msra.mxu0 %v549
        %608 = vmatpush.xpose.msra.mxu0 %v546
        %609 = vmatpush.xpose.msra.mxu0 %v543
        %610 = vmatpush.xpose.msra.mxu0 %v540
        %611 = vmatpush.xpose.msra.mxu0 %v537
        %612 = vmatpush.xpose.msra.mxu0 %v534
        %613 = vmatpush.xpose.msra.mxu0 %v531
        %614 = vmatpush.xpose.msra.mxu0 %v528
        %615 = vmatpush.xpose.msra.mxu0 %v525
        %616 = vmatpush.xpose.msra.mxu0 %v522
        %617 = vmatpush.xpose.msra.mxu0 %v519
        %618 = vmatpush.xpose.msra.mxu0 %v516
        %619 = vmatpush.xpose.msra.mxu0 %v513
        %620 = vmatpush.xpose.msra.mxu0 %v510
        %621 = vmatmul.f32.gmra.mxu0 %v462
        %v622 = vpop.f32.mrf.mxu0
        %v623 = vadd.f32 0.0, %v622
        %624 = vmatmul.f32.gmra.mxu0 %v465
        %v625 = vpop.f32.mrf.mxu0
        %v626 = vadd.f32 0.0, %v625
        %627 = vmatmul.f32.gmra.mxu0 %v468
        %v628 = vpop.f32.mrf.mxu0
        %v629 = vadd.f32 0.0, %v628
        %630 = vmatmul.f32.gmra.mxu0 %v471
        %v631 = vpop.f32.mrf.mxu0
        %v632 = vadd.f32 0.0, %v631
        %633 = vmatmul.f32.gmra.mxu0 %v474
        %v634 = vpop.f32.mrf.mxu0
        %v635 = vadd.f32 0.0, %v634
        %636 = vmatmul.f32.gmra.mxu0 %v477
        %v637 = vpop.f32.mrf.mxu0
        %v638 = vadd.f32 0.0, %v637
        %639 = vmatmul.f32.gmra.mxu0 %v480
        %v640 = vpop.f32.mrf.mxu0
        %v641 = vadd.f32 0.0, %v640
        %642 = vmatmul.f32.gmra.mxu0 %v483
        %v643 = vpop.f32.mrf.mxu0
        %v644 = vadd.f32 0.0, %v643
        %645 = vmatmul.f32.gmra.mxu0 %v486
        %v646 = vpop.f32.mrf.mxu0
        %v647 = vadd.f32 0.0, %v646
        %648 = vmatmul.f32.gmra.mxu0 %v489
        %v649 = vpop.f32.mrf.mxu0
        %v650 = vadd.f32 0.0, %v649
        %651 = vmatmul.f32.gmra.mxu0 %v492
        %v652 = vpop.f32.mrf.mxu0
        %v653 = vadd.f32 0.0, %v652
        %654 = vmatmul.f32.gmra.mxu0 %v495
        %v655 = vpop.f32.mrf.mxu0
        %v656 = vadd.f32 0.0, %v655
        %657 = vmatmul.f32.gmra.mxu0 %v498
        %v658 = vpop.f32.mrf.mxu0
        %v659 = vadd.f32 0.0, %v658
        %660 = vmatmul.f32.gmra.mxu0 %v501
        %v661 = vpop.f32.mrf.mxu0
        %v662 = vadd.f32 0.0, %v661
        %663 = vmatmul.f32.gmra.mxu0 %v504
        %v664 = vpop.f32.mrf.mxu0
        %v665 = vadd.f32 0.0, %v664
        %666 = vmatmul.f32.gmra.mxu0 %v507
        %v667 = vpop.f32.mrf.mxu0
        %v668 = vadd.f32 0.0, %v667
        %669 = vdwg.mxu0
        %670 = vmatpush.xpose.msra.mxu0 %v603
        %671 = vmatpush.xpose.msra.mxu0 %v600
        %672 = vmatpush.xpose.msra.mxu0 %v597
        %673 = vmatpush.xpose.msra.mxu0 %v594
        %674 = vmatpush.xpose.msra.mxu0 %v591
        %675 = vmatpush.xpose.msra.mxu0 %v588
        %676 = vmatpush.xpose.msra.mxu0 %v585
        %677 = vmatpush.xpose.msra.mxu0 %v582
        %678 = vmatpush.xpose.msra.mxu0 %v579
        %679 = vmatpush.xpose.msra.mxu0 %v576
        %680 = vmatpush.xpose.msra.mxu0 %v573
        %681 = vmatpush.xpose.msra.mxu0 %v570
        %682 = vmatpush.xpose.msra.mxu0 %v567
        %683 = vmatpush.xpose.msra.mxu0 %v564
        %684 = vmatpush.xpose.msra.mxu0 %v561
        %685 = vmatpush.xpose.msra.mxu0 %v558
        %686 = vmatmul.f32.gmra.mxu0 %v462
        %v687 = vpop.f32.mrf.mxu0
        %v688 = vadd.f32 0.0, %v687
        %689 = vmatmul.f32.gmra.mxu0 %v465
        %v690 = vpop.f32.mrf.mxu0
        %v691 = vadd.f32 0.0, %v690
        %692 = vmatmul.f32.gmra.mxu0 %v468
        %v693 = vpop.f32.mrf.mxu0
        %v694 = vadd.f32 0.0, %v693
        %695 = vmatmul.f32.gmra.mxu0 %v471
        %v696 = vpop.f32.mrf.mxu0
        %v697 = vadd.f32 0.0, %v696
        %698 = vmatmul.f32.gmra.mxu0 %v474
        %v699 = vpop.f32.mrf.mxu0
        %v700 = vadd.f32 0.0, %v699
        %701 = vmatmul.f32.gmra.mxu0 %v477
        %v702 = vpop.f32.mrf.mxu0
        %v703 = vadd.f32 0.0, %v702
        %704 = vmatmul.f32.gmra.mxu0 %v480
        %v705 = vpop.f32.mrf.mxu0
        %v706 = vadd.f32 0.0, %v705
        %707 = vmatmul.f32.gmra.mxu0 %v483
        %v708 = vpop.f32.mrf.mxu0
        %v709 = vadd.f32 0.0, %v708
        %710 = vmatmul.f32.gmra.mxu0 %v486
        %v711 = vpop.f32.mrf.mxu0
        %v712 = vadd.f32 0.0, %v711
        %713 = vmatmul.f32.gmra.mxu0 %v489
        %v714 = vpop.f32.mrf.mxu0
        %v715 = vadd.f32 0.0, %v714
        %716 = vmatmul.f32.gmra.mxu0 %v492
        %v717 = vpop.f32.mrf.mxu0
        %v718 = vadd.f32 0.0, %v717
        %719 = vmatmul.f32.gmra.mxu0 %v495
        %v720 = vpop.f32.mrf.mxu0
        %v721 = vadd.f32 0.0, %v720
        %722 = vmatmul.f32.gmra.mxu0 %v498
        %v723 = vpop.f32.mrf.mxu0
        %v724 = vadd.f32 0.0, %v723
        %725 = vmatmul.f32.gmra.mxu0 %v501
        %v726 = vpop.f32.mrf.mxu0
        %v727 = vadd.f32 0.0, %v726
        %728 = vmatmul.f32.gmra.mxu0 %v504
        %v729 = vpop.f32.mrf.mxu0
        %v730 = vadd.f32 0.0, %v729
        %731 = vmatmul.f32.gmra.mxu0 %v507
        %v732 = vpop.f32.mrf.mxu0
        %v733 = vadd.f32 0.0, %v732
        %734 = vdwg.mxu0
        %v735 = vadd.f32 %v380, %v623
        %v736 = vadd.f32 %v381, %v688
        %v737 = vadd.f32 %v382, %v626
        %v738 = vadd.f32 %v383, %v691
        %v739 = vadd.f32 %v384, %v629
        %v740 = vadd.f32 %v385, %v694
        %v741 = vadd.f32 %v386, %v632
        %v742 = vadd.f32 %v387, %v697
        %v743 = vadd.f32 %v388, %v635
        %v744 = vadd.f32 %v389, %v700
        %v745 = vadd.f32 %v390, %v638
        %v746 = vadd.f32 %v391, %v703
        %v747 = vadd.f32 %v392, %v641
        %v748 = vadd.f32 %v393, %v706
        %v749 = vadd.f32 %v394, %v644
        %v750 = vadd.f32 %v395, %v709
        %v751 = vadd.f32 %v396, %v647
        %v752 = vadd.f32 %v397, %v712
        %v753 = vadd.f32 %v398, %v650
        %v754 = vadd.f32 %v399, %v715
        %v755 = vadd.f32 %v400, %v653
        %v756 = vadd.f32 %v401, %v718
        %v757 = vadd.f32 %v402, %v656
        %v758 = vadd.f32 %v403, %v721
        %v759 = vadd.f32 %v404, %v659
        %v760 = vadd.f32 %v405, %v724
        %v761 = vadd.f32 %v406, %v662
        %v762 = vadd.f32 %v407, %v727
        %v763 = vadd.f32 %v408, %v665
        %v764 = vadd.f32 %v409, %v730
        %v765 = vadd.f32 %v410, %v668
        %v766 = vadd.f32 %v411, %v733
        %767 = vst [vmem:[#allocation2] sm:$0xff] %v735
        %768 = vst [vmem:[#allocation2 + $0x8] sm:$0xff] %v736
        %769 = vst [vmem:[#allocation2 + $0x10] sm:$0xff] %v737
        %770 = vst [vmem:[#allocation2 + $0x18] sm:$0xff] %v738
        %771 = vst [vmem:[#allocation2 + $0x20] sm:$0xff] %v739
        %772 = vst [vmem:[#allocation2 + $0x28] sm:$0xff] %v740
        %773 = vst [vmem:[#allocation2 + $0x30] sm:$0xff] %v741
        %774 = vst [vmem:[#allocation2 + $0x38] sm:$0xff] %v742
        %775 = vst [vmem:[#allocation2 + $0x40] sm:$0xff] %v743
        %776 = vst [vmem:[#allocation2 + $0x48] sm:$0xff] %v744
        %777 = vst [vmem:[#allocation2 + $0x50] sm:$0xff] %v745
        %778 = vst [vmem:[#allocation2 + $0x58] sm:$0xff] %v746
        %779 = vst [vmem:[#allocation2 + $0x60] sm:$0xff] %v747
        %780 = vst [vmem:[#allocation2 + $0x68] sm:$0xff] %v748
        %781 = vst [vmem:[#allocation2 + $0x70] sm:$0xff] %v749
        %782 = vst [vmem:[#allocation2 + $0x78] sm:$0xff] %v750
        %783 = vst [vmem:[#allocation2 + $0x80] sm:$0xff] %v751
        %784 = vst [vmem:[#allocation2 + $0x88] sm:$0xff] %v752
        %785 = vst [vmem:[#allocation2 + $0x90] sm:$0xff] %v753
        %786 = vst [vmem:[#allocation2 + $0x98] sm:$0xff] %v754
        %787 = vst [vmem:[#allocation2 + $0xa0] sm:$0xff] %v755
        %788 = vst [vmem:[#allocation2 + $0xa8] sm:$0xff] %v756
        %789 = vst [vmem:[#allocation2 + $0xb0] sm:$0xff] %v757
        %790 = vst [vmem:[#allocation2 + $0xb8] sm:$0xff] %v758
        %791 = vst [vmem:[#allocation2 + $0xc0] sm:$0xff] %v759
        %792 = vst [vmem:[#allocation2 + $0xc8] sm:$0xff] %v760
        %793 = vst [vmem:[#allocation2 + $0xd0] sm:$0xff] %v761
        %794 = vst [vmem:[#allocation2 + $0xd8] sm:$0xff] %v762
        %795 = vst [vmem:[#allocation2 + $0xe0] sm:$0xff] %v763
        %796 = vst [vmem:[#allocation2 + $0xe8] sm:$0xff] %v764
        %797 = vst [vmem:[#allocation2 + $0xf0] sm:$0xff] %v765
        %798 = vst [vmem:[#allocation2 + $0xf8] sm:$0xff] %v766
        // Predicated region
        $region41: #{tpu_custom_call.1} parent=35 // pred_check
          %p799 = pneg %p344
        $region42: #{tpu_custom_call.1} parent=35 // pred_check_branch
          %801 = sbr.rel (%p799) target = $region44
        $region43: #{tpu_custom_call.1} parent=35 // pred_region
          %v802 = vld [vmem:[%s318] sm:$0xff]
          %v803 = vld [vmem:[%s318 + $0x8] sm:$0xff]
          %v804 = vld [vmem:[%s318 + $0x10] sm:$0xff]
          %v805 = vld [vmem:[%s318 + $0x18] sm:$0xff]
          %v806 = vld [vmem:[%s318 + $0x20] sm:$0xff]
          %v807 = vld [vmem:[%s318 + $0x28] sm:$0xff]
          %v808 = vld [vmem:[%s318 + $0x30] sm:$0xff]
          %v809 = vld [vmem:[%s318 + $0x38] sm:$0xff]
          %v810 = vld [vmem:[%s318 + $0x40] sm:$0xff]
          %v811 = vld [vmem:[%s318 + $0x48] sm:$0xff]
          %v812 = vld [vmem:[%s318 + $0x50] sm:$0xff]
          %v813 = vld [vmem:[%s318 + $0x58] sm:$0xff]
          %v814 = vld [vmem:[%s318 + $0x60] sm:$0xff]
          %v815 = vld [vmem:[%s318 + $0x68] sm:$0xff]
          %v816 = vld [vmem:[%s318 + $0x70] sm:$0xff]
          %v817 = vld [vmem:[%s318 + $0x78] sm:$0xff]
          %v818 = vld [vmem:[%s323] sm:$0x3]
          %820 = vset.pattern.permute.xlu0 0
          %821 = vperm.xlu0 %820, %v802
          %v822 = vpop.permute.xlu0 %821
          %825 = vset.pattern.permute.xlu0 0
          %826 = vperm.xlu0 %825, %v803
          %v827 = vpop.permute.xlu0 %826
          %830 = vset.pattern.permute.xlu0 0
          %831 = vperm.xlu0 %830, %v804
          %v832 = vpop.permute.xlu0 %831
          %835 = vset.pattern.permute.xlu0 0
          %836 = vperm.xlu0 %835, %v805
          %v837 = vpop.permute.xlu0 %836
          %840 = vset.pattern.permute.xlu0 0
          %841 = vperm.xlu0 %840, %v806
          %v842 = vpop.permute.xlu0 %841
          %845 = vset.pattern.permute.xlu0 0
          %846 = vperm.xlu0 %845, %v807
          %v847 = vpop.permute.xlu0 %846
          %850 = vset.pattern.permute.xlu0 0
          %851 = vperm.xlu0 %850, %v808
          %v852 = vpop.permute.xlu0 %851
          %855 = vset.pattern.permute.xlu0 0
          %856 = vperm.xlu0 %855, %v809
          %v857 = vpop.permute.xlu0 %856
          %860 = vset.pattern.permute.xlu0 0
          %861 = vperm.xlu0 %860, %v810
          %v862 = vpop.permute.xlu0 %861
          %865 = vset.pattern.permute.xlu0 0
          %866 = vperm.xlu0 %865, %v811
          %v867 = vpop.permute.xlu0 %866
          %870 = vset.pattern.permute.xlu0 0
          %871 = vperm.xlu0 %870, %v812
          %v872 = vpop.permute.xlu0 %871
          %875 = vset.pattern.permute.xlu0 0
          %876 = vperm.xlu0 %875, %v813
          %v877 = vpop.permute.xlu0 %876
          %880 = vset.pattern.permute.xlu0 0
          %881 = vperm.xlu0 %880, %v814
          %v882 = vpop.permute.xlu0 %881
          %885 = vset.pattern.permute.xlu0 0
          %886 = vperm.xlu0 %885, %v815
          %v887 = vpop.permute.xlu0 %886
          %890 = vset.pattern.permute.xlu0 0
          %891 = vperm.xlu0 %890, %v816
          %v892 = vpop.permute.xlu0 %891
          %895 = vset.pattern.permute.xlu0 0
          %896 = vperm.xlu0 %895, %v817
          %v897 = vpop.permute.xlu0 %896
          %v900 = vperm.slane %v818, 0
          %v901 = vperm.slane %v818, 1
          %v904 = vadd.f32 %v822, %v900
          %v905 = vadd.f32 %v822, %v901
          %v906 = vadd.f32 %v827, %v900
          %v907 = vadd.f32 %v827, %v901
          %v908 = vadd.f32 %v832, %v900
          %v909 = vadd.f32 %v832, %v901
          %v910 = vadd.f32 %v837, %v900
          %v911 = vadd.f32 %v837, %v901
          %v912 = vadd.f32 %v842, %v900
          %v913 = vadd.f32 %v842, %v901
          %v914 = vadd.f32 %v847, %v900
          %v915 = vadd.f32 %v847, %v901
          %v916 = vadd.f32 %v852, %v900
          %v917 = vadd.f32 %v852, %v901
          %v918 = vadd.f32 %v857, %v900
          %v919 = vadd.f32 %v857, %v901
          %v920 = vadd.f32 %v862, %v900
          %v921 = vadd.f32 %v862, %v901
          %v922 = vadd.f32 %v867, %v900
          %v923 = vadd.f32 %v867, %v901
          %v924 = vadd.f32 %v872, %v900
          %v925 = vadd.f32 %v872, %v901
          %v926 = vadd.f32 %v877, %v900
          %v927 = vadd.f32 %v877, %v901
          %v928 = vadd.f32 %v882, %v900
          %v929 = vadd.f32 %v882, %v901
          %v930 = vadd.f32 %v887, %v900
          %v931 = vadd.f32 %v887, %v901
          %v932 = vadd.f32 %v892, %v900
          %v933 = vadd.f32 %v892, %v901
          %v934 = vadd.f32 %v897, %v900
          %v935 = vadd.f32 %v897, %v901
          %v936 = vld [vmem:[#allocation2] sm:$0xff]
          %v937 = vld [vmem:[#allocation2 + $0x8] sm:$0xff]
          %v938 = vld [vmem:[#allocation2 + $0x10] sm:$0xff]
          %v939 = vld [vmem:[#allocation2 + $0x18] sm:$0xff]
          %v940 = vld [vmem:[#allocation2 + $0x20] sm:$0xff]
          %v941 = vld [vmem:[#allocation2 + $0x28] sm:$0xff]
          %v942 = vld [vmem:[#allocation2 + $0x30] sm:$0xff]
          %v943 = vld [vmem:[#allocation2 + $0x38] sm:$0xff]
          %v944 = vld [vmem:[#allocation2 + $0x40] sm:$0xff]
          %v945 = vld [vmem:[#allocation2 + $0x48] sm:$0xff]
          %v946 = vld [vmem:[#allocation2 + $0x50] sm:$0xff]
          %v947 = vld [vmem:[#allocation2 + $0x58] sm:$0xff]
          %v948 = vld [vmem:[#allocation2 + $0x60] sm:$0xff]
          %v949 = vld [vmem:[#allocation2 + $0x68] sm:$0xff]
          %v950 = vld [vmem:[#allocation2 + $0x70] sm:$0xff]
          %v951 = vld [vmem:[#allocation2 + $0x78] sm:$0xff]
          %v952 = vld [vmem:[#allocation2 + $0x80] sm:$0xff]
          %v953 = vld [vmem:[#allocation2 + $0x88] sm:$0xff]
          %v954 = vld [vmem:[#allocation2 + $0x90] sm:$0xff]
          %v955 = vld [vmem:[#allocation2 + $0x98] sm:$0xff]
          %v956 = vld [vmem:[#allocation2 + $0xa0] sm:$0xff]
          %v957 = vld [vmem:[#allocation2 + $0xa8] sm:$0xff]
          %v958 = vld [vmem:[#allocation2 + $0xb0] sm:$0xff]
          %v959 = vld [vmem:[#allocation2 + $0xb8] sm:$0xff]
          %v960 = vld [vmem:[#allocation2 + $0xc0] sm:$0xff]
          %v961 = vld [vmem:[#allocation2 + $0xc8] sm:$0xff]
          %v962 = vld [vmem:[#allocation2 + $0xd0] sm:$0xff]
          %v963 = vld [vmem:[#allocation2 + $0xd8] sm:$0xff]
          %v964 = vld [vmem:[#allocation2 + $0xe0] sm:$0xff]
          %v965 = vld [vmem:[#allocation2 + $0xe8] sm:$0xff]
          %v966 = vld [vmem:[#allocation2 + $0xf0] sm:$0xff]
          %v967 = vld [vmem:[#allocation2 + $0xf8] sm:$0xff]
          %v968 = vsub.f32 %v904, %v936
          %v969 = vsub.f32 %v905, %v937
          %v970 = vsub.f32 %v906, %v938
          %v971 = vsub.f32 %v907, %v939
          %v972 = vsub.f32 %v908, %v940
          %v973 = vsub.f32 %v909, %v941
          %v974 = vsub.f32 %v910, %v942
          %v975 = vsub.f32 %v911, %v943
          %v976 = vsub.f32 %v912, %v944
          %v977 = vsub.f32 %v913, %v945
          %v978 = vsub.f32 %v914, %v946
          %v979 = vsub.f32 %v915, %v947
          %v980 = vsub.f32 %v916, %v948
          %v981 = vsub.f32 %v917, %v949
          %v982 = vsub.f32 %v918, %v950
          %v983 = vsub.f32 %v919, %v951
          %v984 = vsub.f32 %v920, %v952
          %v985 = vsub.f32 %v921, %v953
          %v986 = vsub.f32 %v922, %v954
          %v987 = vsub.f32 %v923, %v955
          %v988 = vsub.f32 %v924, %v956
          %v989 = vsub.f32 %v925, %v957
          %v990 = vsub.f32 %v926, %v958
          %v991 = vsub.f32 %v927, %v959
          %v992 = vsub.f32 %v928, %v960
          %v993 = vsub.f32 %v929, %v961
          %v994 = vsub.f32 %v930, %v962
          %v995 = vsub.f32 %v931, %v963
          %v996 = vsub.f32 %v932, %v964
          %v997 = vsub.f32 %v933, %v965
          %v998 = vsub.f32 %v934, %v966
          %v999 = vsub.f32 %v935, %v967
          %v1000 = vmax.f32 %v968, 0.0
          %v1001 = vmax.f32 %v969, 0.0
          %v1002 = vmax.f32 %v970, 0.0
          %v1003 = vmax.f32 %v971, 0.0
          %v1004 = vmax.f32 %v972, 0.0
          %v1005 = vmax.f32 %v973, 0.0
          %v1006 = vmax.f32 %v974, 0.0
          %v1007 = vmax.f32 %v975, 0.0
          %v1008 = vmax.f32 %v976, 0.0
          %v1009 = vmax.f32 %v977, 0.0
          %v1010 = vmax.f32 %v978, 0.0
          %v1011 = vmax.f32 %v979, 0.0
          %v1012 = vmax.f32 %v980, 0.0
          %v1013 = vmax.f32 %v981, 0.0
          %v1014 = vmax.f32 %v982, 0.0
          %v1015 = vmax.f32 %v983, 0.0
          %v1016 = vmax.f32 %v984, 0.0
          %v1017 = vmax.f32 %v985, 0.0
          %v1018 = vmax.f32 %v986, 0.0
          %v1019 = vmax.f32 %v987, 0.0
          %v1020 = vmax.f32 %v988, 0.0
          %v1021 = vmax.f32 %v989, 0.0
          %v1022 = vmax.f32 %v990, 0.0
          %v1023 = vmax.f32 %v991, 0.0
          %v1024 = vmax.f32 %v992, 0.0
          %v1025 = vmax.f32 %v993, 0.0
          %v1026 = vmax.f32 %v994, 0.0
          %v1027 = vmax.f32 %v995, 0.0
          %v1028 = vmax.f32 %v996, 0.0
          %v1029 = vmax.f32 %v997, 0.0
          %v1030 = vmax.f32 %v998, 0.0
          %v1031 = vmax.f32 %v999, 0.0
          %v1032 = vmin.f32 %v1000, %v1001
          %1033 = vmin.xlane.f32.xlu0 %v1032
          %v1034 = vpop.xlane.xlu0 %1033
          %v1035 = vmin.f32 %v1002, %v1003
          %1036 = vmin.xlane.f32.xlu0 %v1035
          %v1037 = vpop.xlane.xlu0 %1036
          %v1038 = vmin.f32 %v1004, %v1005
          %1039 = vmin.xlane.f32.xlu0 %v1038
          %v1040 = vpop.xlane.xlu0 %1039
          %v1041 = vmin.f32 %v1006, %v1007
          %1042 = vmin.xlane.f32.xlu0 %v1041
          %v1043 = vpop.xlane.xlu0 %1042
          %v1044 = vmin.f32 %v1008, %v1009
          %1045 = vmin.xlane.f32.xlu0 %v1044
          %v1046 = vpop.xlane.xlu0 %1045
          %v1047 = vmin.f32 %v1010, %v1011
          %1048 = vmin.xlane.f32.xlu0 %v1047
          %v1049 = vpop.xlane.xlu0 %1048
          %v1050 = vmin.f32 %v1012, %v1013
          %1051 = vmin.xlane.f32.xlu0 %v1050
          %v1052 = vpop.xlane.xlu0 %1051
          %v1053 = vmin.f32 %v1014, %v1015
          %1054 = vmin.xlane.f32.xlu0 %v1053
          %v1055 = vpop.xlane.xlu0 %1054
          %v1056 = vmin.f32 %v1016, %v1017
          %1057 = vmin.xlane.f32.xlu0 %v1056
          %v1058 = vpop.xlane.xlu0 %1057
          %v1059 = vmin.f32 %v1018, %v1019
          %1060 = vmin.xlane.f32.xlu0 %v1059
          %v1061 = vpop.xlane.xlu0 %1060
          %v1062 = vmin.f32 %v1020, %v1021
          %1063 = vmin.xlane.f32.xlu0 %v1062
          %v1064 = vpop.xlane.xlu0 %1063
          %v1065 = vmin.f32 %v1022, %v1023
          %1066 = vmin.xlane.f32.xlu0 %v1065
          %v1067 = vpop.xlane.xlu0 %1066
          %v1068 = vmin.f32 %v1024, %v1025
          %1069 = vmin.xlane.f32.xlu0 %v1068
          %v1070 = vpop.xlane.xlu0 %1069
          %v1071 = vmin.f32 %v1026, %v1027
          %1072 = vmin.xlane.f32.xlu0 %v1071
          %v1073 = vpop.xlane.xlu0 %1072
          %v1074 = vmin.f32 %v1028, %v1029
          %1075 = vmin.xlane.f32.xlu0 %v1074
          %v1076 = vpop.xlane.xlu0 %1075
          %v1077 = vmin.f32 %v1030, %v1031
          %1078 = vmin.xlane.f32.xlu0 %v1077
          %v1079 = vpop.xlane.xlu0 %1078
          %v1096 = vlaneseq
          %v1097 = vand.u32 %v1096, 127
          %v1098 = vperm.slane %v1034, %v1097
          %v1099 = vadd.s32 %v1097, 4294967288
          %v1100 = vperm.slane %v1037, %v1099
          %vm1101 = vcmask 130112
          %v1102 = vsel %vm1101, %v1100, %v1098
          %v1103 = vadd.s32 %v1097, 4294967280
          %v1104 = vperm.slane %v1040, %v1103
          %vm1105 = vcmask 195712
          %v1106 = vsel %vm1105, %v1104, %v1102
          %v1107 = vadd.s32 %v1097, 4294967272
          %v1108 = vperm.slane %v1043, %v1107
          %vm1109 = vcmask 261312
          %v1110 = vsel %vm1109, %v1108, %v1106
          %v1111 = vadd.s32 %v1097, 4294967264
          %v1112 = vperm.slane %v1046, %v1111
          %vm1113 = vcmask 326912
          %v1114 = vsel %vm1113, %v1112, %v1110
          %v1115 = vadd.s32 %v1097, 4294967256
          %v1116 = vperm.slane %v1049, %v1115
          %vm1117 = vcmask 392512
          %v1118 = vsel %vm1117, %v1116, %v1114
          %v1119 = vadd.s32 %v1097, 4294967248
          %v1120 = vperm.slane %v1052, %v1119
          %vm1121 = vcmask 458112
          %v1122 = vsel %vm1121, %v1120, %v1118
          %v1123 = vadd.s32 %v1097, 4294967240
          %v1124 = vperm.slane %v1055, %v1123
          %vm1125 = vcmask 523712
          %v1126 = vsel %vm1125, %v1124, %v1122
          %v1127 = vadd.s32 %v1097, 4294967232
          %v1128 = vperm.slane %v1058, %v1127
          %vm1129 = vcmask 589312
          %v1130 = vsel %vm1129, %v1128, %v1126
          %v1131 = vadd.s32 %v1097, 4294967224
          %v1132 = vperm.slane %v1061, %v1131
          %vm1133 = vcmask 654912
          %v1134 = vsel %vm1133, %v1132, %v1130
          %v1135 = vadd.s32 %v1097, 4294967216
          %v1136 = vperm.slane %v1064, %v1135
          %vm1137 = vcmask 720512
          %v1138 = vsel %vm1137, %v1136, %v1134
          %v1139 = vadd.s32 %v1097, 4294967208
          %v1140 = vperm.slane %v1067, %v1139
          %vm1141 = vcmask 786112
          %v1142 = vsel %vm1141, %v1140, %v1138
          %v1143 = vadd.s32 %v1097, 4294967200
          %v1144 = vperm.slane %v1070, %v1143
          %vm1145 = vcmask 851712
          %v1146 = vsel %vm1145, %v1144, %v1142
          %v1147 = vadd.s32 %v1097, 4294967192
          %v1148 = vperm.slane %v1073, %v1147
          %vm1149 = vcmask 917312
          %v1150 = vsel %vm1149, %v1148, %v1146
          %v1151 = vadd.s32 %v1097, 4294967184
          %v1152 = vperm.slane %v1076, %v1151
          %vm1153 = vcmask 982912
          %v1154 = vsel %vm1153, %v1152, %v1150
          %v1155 = vadd.s32 %v1097, 4294967176
          %v1156 = vperm.slane %v1079, %v1155
          %vm1157 = vcmask 1048512
          %v1158 = vsel %vm1157, %v1156, %v1154
          %1160 = vst [vmem:[%s306] sm:$0x1] %v1158
          %v1161 = vmin.f32 %v1000, %v1004
          %v1162 = vmin.f32 %v1002, %v1006
          %v1163 = vmin.f32 %v1161, %v1008
          %v1164 = vmin.f32 %v1162, %v1010
          %v1165 = vmin.f32 %v1163, %v1012
          %v1166 = vmin.f32 %v1164, %v1014
          %v1167 = vmin.f32 %v1165, %v1016
          %v1168 = vmin.f32 %v1166, %v1018
          %v1169 = vmin.f32 %v1167, %v1020
          %v1170 = vmin.f32 %v1168, %v1022
          %v1171 = vmin.f32 %v1169, %v1024
          %v1172 = vmin.f32 %v1170, %v1026
          %v1173 = vmin.f32 %v1171, %v1028
          %v1174 = vmin.f32 %v1172, %v1030
          %v1175 = vmin.f32 %v1173, %v1174
          %v1176 = vrot.slane %v1175, 4
          %v1177 = vmin.f32 %v1175, %v1176
          %v1178 = vrot.slane %v1177, 2
          %v1179 = vmin.f32 %v1177, %v1178
          %v1180 = vrot.slane %v1179, 1
          %v1181 = vmin.f32 %v1179, %v1180
          %v1182 = vmin.f32 %v1001, %v1005
          %v1183 = vmin.f32 %v1003, %v1007
          %v1184 = vmin.f32 %v1182, %v1009
          %v1185 = vmin.f32 %v1183, %v1011
          %v1186 = vmin.f32 %v1184, %v1013
          %v1187 = vmin.f32 %v1185, %v1015
          %v1188 = vmin.f32 %v1186, %v1017
          %v1189 = vmin.f32 %v1187, %v1019
          %v1190 = vmin.f32 %v1188, %v1021
          %v1191 = vmin.f32 %v1189, %v1023
          %v1192 = vmin.f32 %v1190, %v1025
          %v1193 = vmin.f32 %v1191, %v1027
          %v1194 = vmin.f32 %v1192, %v1029
          %v1195 = vmin.f32 %v1193, %v1031
          %v1196 = vmin.f32 %v1194, %v1195
          %v1197 = vrot.slane %v1196, 4
          %v1198 = vmin.f32 %v1196, %v1197
          %v1199 = vrot.slane %v1198, 2
          %v1200 = vmin.f32 %v1198, %v1199
          %v1201 = vrot.slane %v1200, 1
          %v1202 = vmin.f32 %v1200, %v1201
          %v1205 = vrot.slane %v1202, 7
          %vm1206 = vcmask 1040384
          %v1207 = vsel %vm1206, %v1181, %v1205
          %v1209 = vlaneseq
          %vm1210 = vcmp.ge.s32.totalorder %v1209, 0
          %vm1211 = vcmp.lt.s32.totalorder %v1209, 256
          %vm1212 = vmand %vm1210, %vm1211
          %1213 = vst.msk [vmem:[%s313] sm:$0x3] %vm1212, %v1207
        $region44: #{tpu_custom_call.1} parent=35 // pred_fallthru
          _
        %s1214 = sand.u32 %s160, 1
        %s1215 = scalar_lea.sflag [#allocation4], %s1214
        %s1216 = sand.u32 %s160, 1
        %s1217 = scalar_lea.vmem [#allocation3], %s1216
        %s1218 = sand.u32 %s188, 1
        %s1219 = scalar_lea.sflag [#allocation6], %s1218
        %s1220 = sand.u32 %s188, 1
        %s1221 = smul.addr %s1220, 2
        %s1222 = scalar_lea.vmem [#allocation5], %s1221
        // Predicated region
        $region45: #{tpu_custom_call.1} parent=35 // pred_check
          %p1223 = pneg %p170
        $region46: #{tpu_custom_call.1} parent=35 // pred_check_branch
          %1225 = sbr.rel (%p1223) target = $region48
        $region47: #{tpu_custom_call.1} parent=35 // pred_region
          %1227 = vsyncadd %s1215, 0
          %s1228 = smul.addr %s29, 2
          %s1229 = sadd.s32 %s28, %s1228
          %s1230 = scalar_lea.hbm %s4, %s1229
          %s1232 = sshll.u32 %s1217, 4
          %s1233 = int_to_ptr.vmem [resolvable:$true] %s1232
          %s1234 = sshll.u32 %s1230, 4
          %s1235 = int_to_ptr.hbm [resolvable:$true] %s1234
          %1237 = dma.vmem_to_hbm [thread:$0]  %s1233, 16, %s1235, %s1215
        $region48: #{tpu_custom_call.1} parent=35 // pred_fallthru
          _
        // Predicated region
        $region49: #{tpu_custom_call.1} parent=35 // pred_check
          %p1238 = pneg %p198
        $region50: #{tpu_custom_call.1} parent=35 // pred_check_branch
          %1240 = sbr.rel (%p1238) target = $region52
        $region51: #{tpu_custom_call.1} parent=35 // pred_region
          %s1241 = smul.u32 2, %s29
          %1243 = vsyncadd %s1219, 0
          %s1244 = smul.addr %s28, 2
          %s1245 = sadd.s32 %s1241, %s1244
          %s1246 = scalar_lea.hbm %s5, %s1245
          %s1248 = sshll.u32 %s1222, 4
          %s1249 = int_to_ptr.vmem [resolvable:$true] %s1248
          %s1250 = sshll.u32 %s1246, 4
          %s1251 = int_to_ptr.hbm [resolvable:$true] %s1250
          %1253 = dma.vmem_to_hbm [thread:$0]  %s1249, 32, %s1251, %s1219
        $region52: #{tpu_custom_call.1} parent=35 // pred_fallthru
          _
      $region36: #{tpu_custom_call.1} parent=5 // pred_fallthru
        _
      %p1254 = scmp.le.s32.totalorder 2, %s18
      // Predicated region
      $region53: #{tpu_custom_call.1} parent=5 // pred_check
        %p1255 = pneg %p1254
      $region54: #{tpu_custom_call.1} parent=5 // pred_check_branch
        %1257 = sbr.rel (%p1255) target = $region56
      $region55: #{tpu_custom_call.1} parent=5 // pred_region
        %s1258 = ssub.s32 %s18, 2
        // Predicated region
        $region57: #{tpu_custom_call.1} parent=55 // pred_check
          %p1259 = pneg %p176
        $region58: #{tpu_custom_call.1} parent=55 // pred_check_branch
          %1261 = sbr.rel (%p1259) target = $region60
        $region59: #{tpu_custom_call.1} parent=55 // pred_region
          %s1262 = sand.u32 %s161, 1
          %s1263 = scalar_lea.sflag [#allocation4], %s1262
          %s1264 = sand.u32 %s161, 1
          %s1265 = scalar_lea.vmem [#allocation3], %s1264
          %1267 = dma.done %s1263, 16
        $region60: #{tpu_custom_call.1} parent=55 // pred_fallthru
          _
        // Predicated region
        $region61: #{tpu_custom_call.1} parent=55 // pred_check
          %p1268 = pneg %p204
        $region62: #{tpu_custom_call.1} parent=55 // pred_check_branch
          %1270 = sbr.rel (%p1268) target = $region64
        $region63: #{tpu_custom_call.1} parent=55 // pred_region
          %s1271 = sand.u32 %s189, 1
          %s1272 = scalar_lea.sflag [#allocation6], %s1271
          %s1273 = sand.u32 %s189, 1
          %s1274 = smul.addr %s1273, 2
          %s1275 = scalar_lea.vmem [#allocation5], %s1274
          %1277 = dma.done %s1272, 32
        $region64: #{tpu_custom_call.1} parent=55 // pred_fallthru
          _
      $region56: #{tpu_custom_call.1} parent=5 // pred_fallthru
        _
    $region6: #{tpu_custom_call.1} parent=1 // loop_footer
      %s22 = sadd.s32 1, %s18
    $region7: #{tpu_custom_call.1} parent=1 // loop_footer_branch
      %17 = sbr.rel target = $region3
    $region8: #{tpu_custom_call.1} parent=1 // loop_exit
      _
    %1278 = vsyncpa [#allocation4], 1
    %s1279 = scalar_lea.sflag [#allocation4], 1
    %1280 = vsyncpa %s1279, 1
    %1281 = vsyncpa [#allocation6], 1
    %s1282 = scalar_lea.sflag [#allocation6], 1
    %1283 = vsyncpa %s1282, 1

</llo_original>
